<compile_context>
chip_gen: v5e
topology: v5e:2x2
jax: 0.10.0
libtpu: 0.0.40
codegen_flags: <defaults>
</compile_context>

<pallas_src>
import math
import jax
import jax.numpy as jnp
from jax.experimental import pallas as pl
from jax.experimental.pallas import tpu as pltpu

# ----- module configuration --------------------------------------------------
D_MODEL = 32
N_HEADS = 4
D_QUERIES = 8      # per-head query/key dim
D_VALUES = 8       # per-head value dim
SELF_ATTN = True
IN_DECODER = False  # no causal mask
LN_EPS = 1e-5
MXU_DTYPE = jnp.bfloat16   # matmul operand dtype; accumulation stays f32
NEG_INF = -1e30            # finite mask value: avoids NaN rows if a length is 0


# ----- single fused kernel ----------------------------------------------------
def _make_fused_mha_kernel(batch, seq, n_heads, d_q, d_v, return_aw):
    def kernel(len_ref, x_ref, g_ref, beta_ref, wqkv_ref, bqkv_ref,
               wo_ref, bo_ref, out_ref, *rest):
        if return_aw:
            aw_ref, ctx_ref = rest
        else:
            aw_ref = None
            (ctx_ref,) = rest

        x = x_ref[...]                                   # (B*N, D) f32

        # ---- LayerNorm over the whole flattened batch (one pass, f32) -------
        mean = jnp.mean(x, axis=-1, keepdims=True)
        var = jnp.mean((x - mean) ** 2, axis=-1, keepdims=True)
        xn = (x - mean) * jax.lax.rsqrt(var + LN_EPS)
        xn = xn * g_ref[...] + beta_ref[...]

        # ---- fused QKV projection: one (B*N, D) x (D, H*(2*dq+dv)) GEMM -----
        # (1/sqrt(d_q) was folded into the Wq / bq columns at prep time)
        qkv = jnp.dot(xn.astype(MXU_DTYPE), wqkv_ref[...],
                      preferred_element_type=jnp.float32) + bqkv_ref[...]
        qkv = qkv.astype(MXU_DTYPE)          # single cast, hoisted out of loops

        off_k = n_heads * d_q
        off_v = 2 * n_heads * d_q
        # hoisted; identical for every batch / head
        col_ids = jax.lax.broadcasted_iota(jnp.int32, (seq, seq), 1)

        # NOTE: per-head slices stay 8 lanes wide because d_q = d_v = 8 << 128;
        # at this problem size tile-aligned per-head reads are not reachable.
        for b in range(batch):                           # static unroll (B=2)
            kv_len = len_ref[b]                          # scalar read from SMEM
            key_mask = col_ids < kv_len
            qkv_b = qkv[b * seq:(b + 1) * seq, :]        # (N, H*(2*dq+dv)) bf16

            for h in range(n_heads):                     # static unroll (H=4)
                q_h = qkv_b[:, h * d_q:(h + 1) * d_q]
                k_h = qkv_b[:, off_k + h * d_q: off_k + (h + 1) * d_q]
                v_h = qkv_b[:, off_v + h * d_v: off_v + (h + 1) * d_v]

                # contract last dims of q and k directly (no explicit k.T)
                s = jax.lax.dot_general(
                    q_h, k_h, (((1,), (1,)), ((), ())),
                    preferred_element_type=jnp.float32)   # (N, N) f32 scores

                s = jnp.where(key_mask, s, NEG_INF)       # key-padding mask
                if SELF_ATTN and IN_DECODER:              # causal mask (off here)
                    row = jax.lax.broadcasted_iota(jnp.int32, (seq, seq), 0)
                    s = jnp.where(col_ids <= row, s, NEG_INF)

                m = jnp.max(s, axis=-1, keepdims=True)
                p = jnp.exp(s - m)
                p = p * pl.reciprocal(jnp.sum(p, axis=-1, keepdims=True),
                                      approx=True)

                if return_aw:
                    aw_ref[b * n_heads + h] = p           # (N, N) viz weights

                # dropout == identity (eval mode)
                ctx_h = jnp.dot(p.astype(MXU_DTYPE), v_h,
                                preferred_element_type=jnp.float32)  # (N, dv)

                # stash per-head context; merged output GEMM happens once below
                ctx_ref[b * seq:(b + 1) * seq, h * d_v:(h + 1) * d_v] = ctx_h

        # ---- single merged head-concat + output projection for whole batch --
        out = jnp.dot(ctx_ref[...].astype(MXU_DTYPE), wo_ref[...],
                      preferred_element_type=jnp.float32) + bo_ref[...]
        out_ref[...] = out.astype(out_ref.dtype)          # one lane-contiguous store
    return kernel


def fused_self_attention(x, kv_lengths, fp, return_attn_weights=False):
    B, N, D = x.shape
    H, dq, dv = N_HEADS, D_QUERIES, D_VALUES
    d_qkv = fp['wqkv'].shape[1]

    x_flat = x.reshape(B * N, D)    # free, wrapper-side reshape

    kernel = _make_fused_mha_kernel(B, N, H, dq, dv, return_attn_weights)

    out_spec = pl.BlockSpec((B * N, D), lambda i, lens: (0, 0))
    if return_attn_weights:
        out_shape = (jax.ShapeDtypeStruct((B * N, D), jnp.float32),
                     jax.ShapeDtypeStruct((B * H, N, N), jnp.float32))
        out_specs = (out_spec,
                     pl.BlockSpec((B * H, N, N), lambda i, lens: (0, 0, 0)))
    else:
        out_shape = jax.ShapeDtypeStruct((B * N, D), jnp.float32)
        out_specs = out_spec

    grid_spec = pltpu.PrefetchScalarGridSpec(
        num_scalar_prefetch=1,                           # kv_lengths -> SMEM
        grid=(1,),                                       # single fat step: per-step
                                                         # work << step overhead, so
                                                         # no megacore split here
        in_specs=[
            pl.BlockSpec((B * N, D), lambda i, lens: (0, 0)),      # x (flattened)
            pl.BlockSpec((1, D), lambda i, lens: (0, 0)),          # ln gamma
            pl.BlockSpec((1, D), lambda i, lens: (0, 0)),          # ln beta
            pl.BlockSpec((D, d_qkv), lambda i, lens: (0, 0)),      # Wqkv (bf16)
            pl.BlockSpec((1, d_qkv), lambda i, lens: (0, 0)),      # bqkv
            pl.BlockSpec((H * dv, D), lambda i, lens: (0, 0)),     # Wo (bf16)
            pl.BlockSpec((1, D), lambda i, lens: (0, 0)),          # bo
        ],
        out_specs=out_specs,
        scratch_shapes=[pltpu.VMEM((B * N, H * dv), jnp.float32)], # ctx scratch
    )

    results = pl.pallas_call(
        kernel,
        out_shape=out_shape,
        grid_spec=grid_spec,
        compiler_params=pltpu.CompilerParams(
            dimension_semantics=("arbitrary",)),
    )(kv_lengths, x_flat, fp['ln_g'], fp['ln_b'], fp['wqkv'], fp['bqkv'],
      fp['wo'], fp['bo'])

    if return_attn_weights:
        out_flat, aw = results
    else:
        out_flat, aw = results, None
    return out_flat.reshape(B, N, D), aw


# ----- full forward (mirrors MultiHeadAttention.forward) ----------------------
def multihead_attention_forward(fused_params, query_seq, key_seq, value_seq,
                                kv_lengths, return_attn_weights=False):
    """Self-attention eval-mode forward.  The fused kernel assumes the
    query/key/value sequences are the same tensor (standard self-attention),
    which is how this configuration of the module is used."""
    del key_seq, value_seq
    out, aw = fused_self_attention(query_seq, kv_lengths.astype(jnp.int32),
                                   fused_params, return_attn_weights)
    # aw (if requested) already has torch's (B*H, Nq, Nk) visualization shape.
    return out, aw, None               # (output, attention_weights, lite_conv_output)


# ----- parameters -------------------------------------------------------------
def init_params(key):
    """Raw PyTorch-style parameters (weights stored (in, out): y = x @ W + b)."""
    ks = jax.random.split(key, 10)
    s = 0.1
    return {
        'ln_g': 1.0 + s * jax.random.normal(ks[0], (1, D_MODEL), jnp.float32),
        'ln_b': s * jax.random.normal(ks[1], (1, D_MODEL), jnp.float32),
        'wq': s * jax.random.normal(ks[2], (D_MODEL, N_HEADS * D_QUERIES), jnp.float32),
        'bq': s * jax.random.normal(ks[3], (1, N_HEADS * D_QUERIES), jnp.float32),
        'wk': s * jax.random.normal(ks[4], (D_MODEL, N_HEADS * D_QUERIES), jnp.float32),
        'bk': s * jax.random.normal(ks[5], (1, N_HEADS * D_QUERIES), jnp.float32),
        'wv': s * jax.random.normal(ks[6], (D_MODEL, N_HEADS * D_VALUES), jnp.float32),
        'bv': s * jax.random.normal(ks[7], (1, N_HEADS * D_VALUES), jnp.float32),
        'wo': s * jax.random.normal(ks[8], (N_HEADS * D_VALUES, D_MODEL), jnp.float32),
        'bo': s * jax.random.normal(ks[9], (1, D_MODEL), jnp.float32),
    }


def prepare_fused_params(params):
    """One-time preprocessing for the fused kernel:
      * concatenate Wq|Wk|Wv (and biases) for the single QKV GEMM,
      * fold the 1/sqrt(d_q) attention scale into Wq / bq,
      * cast the matmul weights (Wqkv AND Wo) to bf16 (MXU operands; f32 acc)."""
    scale = 1.0 / math.sqrt(D_QUERIES)
    wqkv = jnp.concatenate(
        [params['wq'] * scale, params['wk'], params['wv']], axis=1)
    bqkv = jnp.concatenate(
        [params['bq'] * scale, params['bk'], params['bv']], axis=1)
    return {
        'ln_g': params['ln_g'],
        'ln_b': params['ln_b'],
        'wqkv': wqkv.astype(MXU_DTYPE),          # (D, H*(2*dq+dv))
        'bqkv': bqkv.astype(jnp.float32),        # (1, H*(2*dq+dv))
        'wo': params['wo'].astype(MXU_DTYPE),    # (H*dv, D), pre-cast (hoisted)
        'bo': params['bo'].astype(jnp.float32),
    }


# ----- pure-JAX reference (for validation) ------------------------------------
def reference_forward(params, qs, ks_, vs, lens):
    def ln(x):
        m = x.mean(-1, keepdims=True)
        v = ((x - m) ** 2).mean(-1, keepdims=True)
        return (x - m) / jnp.sqrt(v + LN_EPS) * params['ln_g'][0] + params['ln_b'][0]

    q = ln(qs) @ params['wq'] + params['bq'][0]
    k = ln(ks_) @ params['wk'] + params['bk'][0]
    v = ln(vs) @ params['wv'] + params['bv'][0]
    B, Nq, _ = qs.shape
    Nk = ks_.shape[1]
    H, dq, dv = N_HEADS, D_QUERIES, D_VALUES
    qh = q.reshape(B, Nq, H, dq).transpose(0, 2, 1, 3).reshape(B * H, Nq, dq)
    kh = k.reshape(B, Nk, H, dq).transpose(0, 2, 1, 3).reshape(B * H, Nk, dq)
    vh = v.reshape(B, Nk, H, dv).transpose(0, 2, 1, 3).reshape(B * H, Nk, dv)
    s = jnp.einsum('bqd,bkd->bqk', qh, kh) / math.sqrt(dq)
    lens_h = jnp.repeat(lens.astype(jnp.int32), H)
    col = jnp.arange(Nk)[None, None, :]
    s = jnp.where(col < lens_h[:, None, None], s, -jnp.inf)
    p = jax.nn.softmax(s, axis=-1)
    ctx = jnp.einsum('bqk,bkd->bqd', p, vh)
    seqs = ctx.reshape(B, H, Nq, dv).transpose(0, 2, 1, 3).reshape(B, Nq, H * dv)
    out = seqs @ params['wo'] + params['bo'][0]
    return out, p


if __name__ == "__main__":
    B, SEQ = 2, 8
    key = jax.random.PRNGKey(0)
    kp, kx = jax.random.split(key)
    params = init_params(kp)
    fused_params = prepare_fused_params(params)      # one-time preprocessing

    x = jax.random.normal(kx, (B, SEQ, D_MODEL), jnp.float32)
    kv_lengths = jnp.array([8, 5], dtype=jnp.int32)

    # perf path (default): no attention-weights output -> ~80% less output DMA
    out, attn_w, lite_conv_out = multihead_attention_forward(
        fused_params, x, x, x, kv_lengths)
    out = jax.block_until_ready(out)
    assert out.shape == (B, SEQ, D_MODEL)
    assert attn_w is None and lite_conv_out is None

    # validation path: also return attention weights (torch visualization tensor)
    out_w, attn_ww, _ = multihead_attention_forward(
        fused_params, x, x, x, kv_lengths, return_attn_weights=True)
    out_w = jax.block_until_ready(out_w)
    attn_ww = jax.block_until_ready(attn_ww)

    ref_out, ref_attn = reference_forward(params, x, x, x, kv_lengths)
    assert attn_ww.shape == (B * N_HEADS, SEQ, SEQ)
    # tolerance accounts for bf16 MXU operands (f32 accumulation) + approx recip
    assert jnp.allclose(out, ref_out, rtol=2e-2, atol=2e-2), \
        float(jnp.max(jnp.abs(out - ref_out)))
    assert jnp.allclose(out_w, ref_out, rtol=2e-2, atol=2e-2), \
        float(jnp.max(jnp.abs(out_w - ref_out)))
    assert jnp.allclose(attn_ww, ref_attn, rtol=2e-2, atol=2e-2), \
        float(jnp.max(jnp.abs(attn_ww - ref_attn)))

    print("KERNEL_OK")
</pallas_src>

<mosaic_0001>
module attributes {stable_mosaic.version = 11 : i64} {
  func.func @kernel(%arg0: i32, %arg1: memref<2xi32, #tpu.memory_space<smem>>, %arg2: memref<16x32xf32, #tpu.memory_space<vmem>>, %arg3: memref<1x32xf32, #tpu.memory_space<vmem>>, %arg4: memref<1x32xf32, #tpu.memory_space<vmem>>, %arg5: memref<32x96xbf16, #tpu.memory_space<vmem>>, %arg6: memref<1x96xf32, #tpu.memory_space<vmem>>, %arg7: memref<32x32xbf16, #tpu.memory_space<vmem>>, %arg8: memref<1x32xf32, #tpu.memory_space<vmem>>, %arg9: memref<16x32xf32, #tpu.memory_space<vmem>>, %arg10: memref<16x32xf32, #tpu.memory_space<vmem>>) attributes {dimension_semantics = [#tpu.dimension_semantics<arbitrary>], iteration_bounds = array<i64: 1>, scalar_prefetch = 1 : i64, scratch_operands = 1 : i64, tpu.core_type = #tpu.core_type<tc>, window_params = [{pipeline_mode = #tpu.pipeline_mode<synchronous>, transform_indices = @transform_0, window_bounds = array<i64: 16, 32>}, {pipeline_mode = #tpu.pipeline_mode<synchronous>, transform_indices = @transform_1, window_bounds = array<i64: 1, 32>}, {pipeline_mode = #tpu.pipeline_mode<synchronous>, transform_indices = @transform_2, window_bounds = array<i64: 1, 32>}, {pipeline_mode = #tpu.pipeline_mode<synchronous>, transform_indices = @transform_3, window_bounds = array<i64: 32, 96>}, {pipeline_mode = #tpu.pipeline_mode<synchronous>, transform_indices = @transform_4, window_bounds = array<i64: 1, 96>}, {pipeline_mode = #tpu.pipeline_mode<synchronous>, transform_indices = @transform_5, window_bounds = array<i64: 32, 32>}, {pipeline_mode = #tpu.pipeline_mode<synchronous>, transform_indices = @transform_6, window_bounds = array<i64: 1, 32>}, {pipeline_mode = #tpu.pipeline_mode<synchronous>, transform_indices = @transform_7, window_bounds = array<i64: 16, 32>}]} {
    %c0 = arith.constant 0 : index
    %c0_0 = arith.constant 0 : index
    %0 = vector.load %arg2[%c0, %c0_0] : memref<16x32xf32, #tpu.memory_space<vmem>>, vector<16x32xf32>
    %cst = arith.constant dense<0.000000e+00> : vector<16xf32>
    %1 = vector.multi_reduction <add>, %0, %cst [1] : vector<16x32xf32> to vector<16xf32>
    %2 = vector.shape_cast %1 : vector<16xf32> to vector<16x1xf32>
    %cst_1 = arith.constant 3.200000e+01 : f32
    %3 = vector.broadcast %cst_1 : f32 to vector<16x1xf32>
    %4 = arith.divf %2, %3 : vector<16x1xf32>
    %5 = vector.broadcast %4 : vector<16x1xf32> to vector<16x32xf32>
    %6 = arith.subf %0, %5 : vector<16x32xf32>
    %7 = arith.mulf %6, %6 : vector<16x32xf32>
    %cst_2 = arith.constant dense<0.000000e+00> : vector<16xf32>
    %8 = vector.multi_reduction <add>, %7, %cst_2 [1] : vector<16x32xf32> to vector<16xf32>
    %9 = vector.shape_cast %8 : vector<16xf32> to vector<16x1xf32>
    %cst_3 = arith.constant 3.200000e+01 : f32
    %10 = vector.broadcast %cst_3 : f32 to vector<16x1xf32>
    %11 = arith.divf %9, %10 : vector<16x1xf32>
    %12 = vector.broadcast %4 : vector<16x1xf32> to vector<16x32xf32>
    %13 = arith.subf %0, %12 : vector<16x32xf32>
    %cst_4 = arith.constant 9.99999974E-6 : f32
    %14 = vector.broadcast %cst_4 : f32 to vector<16x1xf32>
    %15 = arith.addf %11, %14 : vector<16x1xf32>
    %16 = math.rsqrt %15 : vector<16x1xf32>
    %17 = vector.broadcast %16 : vector<16x1xf32> to vector<16x32xf32>
    %18 = arith.mulf %13, %17 : vector<16x32xf32>
    %c0_5 = arith.constant 0 : index
    %c0_6 = arith.constant 0 : index
    %19 = vector.load %arg3[%c0_5, %c0_6] : memref<1x32xf32, #tpu.memory_space<vmem>>, vector<1x32xf32>
    %20 = vector.broadcast %19 : vector<1x32xf32> to vector<16x32xf32>
    %21 = arith.mulf %18, %20 : vector<16x32xf32>
    %c0_7 = arith.constant 0 : index
    %c0_8 = arith.constant 0 : index
    %22 = vector.load %arg4[%c0_7, %c0_8] : memref<1x32xf32, #tpu.memory_space<vmem>>, vector<1x32xf32>
    %23 = vector.broadcast %22 : vector<1x32xf32> to vector<16x32xf32>
    %24 = arith.addf %21, %23 : vector<16x32xf32>
    %25 = arith.truncf %24 : vector<16x32xf32> to vector<16x32xbf16>
    %c0_9 = arith.constant 0 : index
    %c0_10 = arith.constant 0 : index
    %26 = vector.load %arg5[%c0_9, %c0_10] : memref<32x96xbf16, #tpu.memory_space<vmem>>, vector<32x96xbf16>
    %cst_11 = arith.constant dense<0.000000e+00> : vector<16x96xf32>
    %27 = tpu.matmul %25, %26, %cst_11 {dimension_numbers = #tpu.dot_dimension_numbers<[1], [0], [0], [1], [0, 0, 1, 1], [], []>} : vector<16x32xbf16>, vector<32x96xbf16>, vector<16x96xf32> -> vector<16x96xf32>
    %c0_12 = arith.constant 0 : index
    %c0_13 = arith.constant 0 : index
    %28 = vector.load %arg6[%c0_12, %c0_13] : memref<1x96xf32, #tpu.memory_space<vmem>>, vector<1x96xf32>
    %29 = vector.broadcast %28 : vector<1x96xf32> to vector<16x96xf32>
    %30 = arith.addf %27, %29 : vector<16x96xf32>
    %31 = arith.truncf %30 : vector<16x96xf32> to vector<16x96xbf16>
    %32 = tpu.iota {dimensions = array<i32: 1>} : vector<8x8xi32>
    %c0_14 = arith.constant 0 : index
    %33 = memref.load %arg1[%c0_14] : memref<2xi32, #tpu.memory_space<smem>>
    %34 = vector.broadcast %33 : i32 to vector<8x8xi32>
    %35 = arith.cmpi slt, %32, %34 : vector<8x8xi32>
    %36 = vector.extract_strided_slice %31 {offsets = [0, 0], sizes = [8, 96], strides = [1, 1]} : vector<16x96xbf16> to vector<8x96xbf16>
    %37 = vector.extract_strided_slice %36 {offsets = [0, 0], sizes = [8, 8], strides = [1, 1]} : vector<8x96xbf16> to vector<8x8xbf16>
    %38 = vector.extract_strided_slice %36 {offsets = [0, 32], sizes = [8, 8], strides = [1, 1]} : vector<8x96xbf16> to vector<8x8xbf16>
    %39 = vector.extract_strided_slice %36 {offsets = [0, 64], sizes = [8, 8], strides = [1, 1]} : vector<8x96xbf16> to vector<8x8xbf16>
    %cst_15 = arith.constant dense<0.000000e+00> : vector<8x8xf32>
    %40 = tpu.matmul %37, %38, %cst_15 {dimension_numbers = #tpu.dot_dimension_numbers<[1], [1], [0], [0], [0, 0, 1, 0], [], []>} : vector<8x8xbf16>, vector<8x8xbf16>, vector<8x8xf32> -> vector<8x8xf32>
    %cst_16 = arith.constant -1.000000e+30 : f32
    %41 = vector.broadcast %cst_16 : f32 to vector<8x8xf32>
    %42 = arith.select %35, %40, %41 : vector<8x8xi1>, vector<8x8xf32>
    %cst_17 = arith.constant dense<0xFF800000> : vector<8xf32>
    %43 = vector.multi_reduction <maximumf>, %42, %cst_17 [1] : vector<8x8xf32> to vector<8xf32>
    %44 = vector.shape_cast %43 : vector<8xf32> to vector<8x1xf32>
    %45 = vector.broadcast %44 : vector<8x1xf32> to vector<8x8xf32>
    %46 = arith.subf %42, %45 : vector<8x8xf32>
    %47 = math.exp %46 : vector<8x8xf32>
    %cst_18 = arith.constant dense<0.000000e+00> : vector<8xf32>
    %48 = vector.multi_reduction <add>, %47, %cst_18 [1] : vector<8x8xf32> to vector<8xf32>
    %49 = vector.shape_cast %48 : vector<8xf32> to vector<8x1xf32>
    %50 = tpu.reciprocal %49 {approx = true} : vector<8x1xf32> -> vector<8x1xf32>
    %51 = vector.broadcast %50 : vector<8x1xf32> to vector<8x8xf32>
    %52 = arith.mulf %47, %51 : vector<8x8xf32>
    %53 = arith.truncf %52 : vector<8x8xf32> to vector<8x8xbf16>
    %cst_19 = arith.constant dense<0.000000e+00> : vector<8x8xf32>
    %54 = tpu.matmul %53, %39, %cst_19 {dimension_numbers = #tpu.dot_dimension_numbers<[1], [0], [0], [1], [0, 0, 1, 1], [], []>} : vector<8x8xbf16>, vector<8x8xbf16>, vector<8x8xf32> -> vector<8x8xf32>
    %c0_20 = arith.constant 0 : index
    %c0_21 = arith.constant 0 : index
    %55 = vector.load %arg10[%c0_20, %c0_21] : memref<16x32xf32, #tpu.memory_space<vmem>>, vector<8x8xf32>
    tpu.vector_store %arg10[%c0_20, %c0_21], %54 {strides = array<i32>} : memref<16x32xf32, #tpu.memory_space<vmem>>, vector<8x8xf32>,
    %56 = vector.extract_strided_slice %36 {offsets = [0, 8], sizes = [8, 8], strides = [1, 1]} : vector<8x96xbf16> to vector<8x8xbf16>
    %57 = vector.extract_strided_slice %36 {offsets = [0, 40], sizes = [8, 8], strides = [1, 1]} : vector<8x96xbf16> to vector<8x8xbf16>
    %58 = vector.extract_strided_slice %36 {offsets = [0, 72], sizes = [8, 8], strides = [1, 1]} : vector<8x96xbf16> to vector<8x8xbf16>
    %cst_22 = arith.constant dense<0.000000e+00> : vector<8x8xf32>
    %59 = tpu.matmul %56, %57, %cst_22 {dimension_numbers = #tpu.dot_dimension_numbers<[1], [1], [0], [0], [0, 0, 1, 0], [], []>} : vector<8x8xbf16>, vector<8x8xbf16>, vector<8x8xf32> -> vector<8x8xf32>
    %cst_23 = arith.constant -1.000000e+30 : f32
    %60 = vector.broadcast %cst_23 : f32 to vector<8x8xf32>
    %61 = arith.select %35, %59, %60 : vector<8x8xi1>, vector<8x8xf32>
    %cst_24 = arith.constant dense<0xFF800000> : vector<8xf32>
    %62 = vector.multi_reduction <maximumf>, %61, %cst_24 [1] : vector<8x8xf32> to vector<8xf32>
    %63 = vector.shape_cast %62 : vector<8xf32> to vector<8x1xf32>
    %64 = vector.broadcast %63 : vector<8x1xf32> to vector<8x8xf32>
    %65 = arith.subf %61, %64 : vector<8x8xf32>
    %66 = math.exp %65 : vector<8x8xf32>
    %cst_25 = arith.constant dense<0.000000e+00> : vector<8xf32>
    %67 = vector.multi_reduction <add>, %66, %cst_25 [1] : vector<8x8xf32> to vector<8xf32>
    %68 = vector.shape_cast %67 : vector<8xf32> to vector<8x1xf32>
    %69 = tpu.reciprocal %68 {approx = true} : vector<8x1xf32> -> vector<8x1xf32>
    %70 = vector.broadcast %69 : vector<8x1xf32> to vector<8x8xf32>
    %71 = arith.mulf %66, %70 : vector<8x8xf32>
    %72 = arith.truncf %71 : vector<8x8xf32> to vector<8x8xbf16>
    %cst_26 = arith.constant dense<0.000000e+00> : vector<8x8xf32>
    %73 = tpu.matmul %72, %58, %cst_26 {dimension_numbers = #tpu.dot_dimension_numbers<[1], [0], [0], [1], [0, 0, 1, 1], [], []>} : vector<8x8xbf16>, vector<8x8xbf16>, vector<8x8xf32> -> vector<8x8xf32>
    %c0_27 = arith.constant 0 : index
    %c8 = arith.constant 8 : index
    %74 = vector.load %arg10[%c0_27, %c8] : memref<16x32xf32, #tpu.memory_space<vmem>>, vector<8x8xf32>
    tpu.vector_store %arg10[%c0_27, %c8], %73 {strides = array<i32>} : memref<16x32xf32, #tpu.memory_space<vmem>>, vector<8x8xf32>,
    %75 = vector.extract_strided_slice %36 {offsets = [0, 16], sizes = [8, 8], strides = [1, 1]} : vector<8x96xbf16> to vector<8x8xbf16>
    %76 = vector.extract_strided_slice %36 {offsets = [0, 48], sizes = [8, 8], strides = [1, 1]} : vector<8x96xbf16> to vector<8x8xbf16>
    %77 = vector.extract_strided_slice %36 {offsets = [0, 80], sizes = [8, 8], strides = [1, 1]} : vector<8x96xbf16> to vector<8x8xbf16>
    %cst_28 = arith.constant dense<0.000000e+00> : vector<8x8xf32>
    %78 = tpu.matmul %75, %76, %cst_28 {dimension_numbers = #tpu.dot_dimension_numbers<[1], [1], [0], [0], [0, 0, 1, 0], [], []>} : vector<8x8xbf16>, vector<8x8xbf16>, vector<8x8xf32> -> vector<8x8xf32>
    %cst_29 = arith.constant -1.000000e+30 : f32
    %79 = vector.broadcast %cst_29 : f32 to vector<8x8xf32>
    %80 = arith.select %35, %78, %79 : vector<8x8xi1>, vector<8x8xf32>
    %cst_30 = arith.constant dense<0xFF800000> : vector<8xf32>
    %81 = vector.multi_reduction <maximumf>, %80, %cst_30 [1] : vector<8x8xf32> to vector<8xf32>
    %82 = vector.shape_cast %81 : vector<8xf32> to vector<8x1xf32>
    %83 = vector.broadcast %82 : vector<8x1xf32> to vector<8x8xf32>
    %84 = arith.subf %80, %83 : vector<8x8xf32>
    %85 = math.exp %84 : vector<8x8xf32>
    %cst_31 = arith.constant dense<0.000000e+00> : vector<8xf32>
    %86 = vector.multi_reduction <add>, %85, %cst_31 [1] : vector<8x8xf32> to vector<8xf32>
    %87 = vector.shape_cast %86 : vector<8xf32> to vector<8x1xf32>
    %88 = tpu.reciprocal %87 {approx = true} : vector<8x1xf32> -> vector<8x1xf32>
    %89 = vector.broadcast %88 : vector<8x1xf32> to vector<8x8xf32>
    %90 = arith.mulf %85, %89 : vector<8x8xf32>
    %91 = arith.truncf %90 : vector<8x8xf32> to vector<8x8xbf16>
    %cst_32 = arith.constant dense<0.000000e+00> : vector<8x8xf32>
    %92 = tpu.matmul %91, %77, %cst_32 {dimension_numbers = #tpu.dot_dimension_numbers<[1], [0], [0], [1], [0, 0, 1, 1], [], []>} : vector<8x8xbf16>, vector<8x8xbf16>, vector<8x8xf32> -> vector<8x8xf32>
    %c0_33 = arith.constant 0 : index
    %c16 = arith.constant 16 : index
    %93 = vector.load %arg10[%c0_33, %c16] : memref<16x32xf32, #tpu.memory_space<vmem>>, vector<8x8xf32>
    tpu.vector_store %arg10[%c0_33, %c16], %92 {strides = array<i32>} : memref<16x32xf32, #tpu.memory_space<vmem>>, vector<8x8xf32>,
    %94 = vector.extract_strided_slice %36 {offsets = [0, 24], sizes = [8, 8], strides = [1, 1]} : vector<8x96xbf16> to vector<8x8xbf16>
    %95 = vector.extract_strided_slice %36 {offsets = [0, 56], sizes = [8, 8], strides = [1, 1]} : vector<8x96xbf16> to vector<8x8xbf16>
    %96 = vector.extract_strided_slice %36 {offsets = [0, 88], sizes = [8, 8], strides = [1, 1]} : vector<8x96xbf16> to vector<8x8xbf16>
    %cst_34 = arith.constant dense<0.000000e+00> : vector<8x8xf32>
    %97 = tpu.matmul %94, %95, %cst_34 {dimension_numbers = #tpu.dot_dimension_numbers<[1], [1], [0], [0], [0, 0, 1, 0], [], []>} : vector<8x8xbf16>, vector<8x8xbf16>, vector<8x8xf32> -> vector<8x8xf32>
    %cst_35 = arith.constant -1.000000e+30 : f32
    %98 = vector.broadcast %cst_35 : f32 to vector<8x8xf32>
    %99 = arith.select %35, %97, %98 : vector<8x8xi1>, vector<8x8xf32>
    %cst_36 = arith.constant dense<0xFF800000> : vector<8xf32>
    %100 = vector.multi_reduction <maximumf>, %99, %cst_36 [1] : vector<8x8xf32> to vector<8xf32>
    %101 = vector.shape_cast %100 : vector<8xf32> to vector<8x1xf32>
    %102 = vector.broadcast %101 : vector<8x1xf32> to vector<8x8xf32>
    %103 = arith.subf %99, %102 : vector<8x8xf32>
    %104 = math.exp %103 : vector<8x8xf32>
    %cst_37 = arith.constant dense<0.000000e+00> : vector<8xf32>
    %105 = vector.multi_reduction <add>, %104, %cst_37 [1] : vector<8x8xf32> to vector<8xf32>
    %106 = vector.shape_cast %105 : vector<8xf32> to vector<8x1xf32>
    %107 = tpu.reciprocal %106 {approx = true} : vector<8x1xf32> -> vector<8x1xf32>
    %108 = vector.broadcast %107 : vector<8x1xf32> to vector<8x8xf32>
    %109 = arith.mulf %104, %108 : vector<8x8xf32>
    %110 = arith.truncf %109 : vector<8x8xf32> to vector<8x8xbf16>
    %cst_38 = arith.constant dense<0.000000e+00> : vector<8x8xf32>
    %111 = tpu.matmul %110, %96, %cst_38 {dimension_numbers = #tpu.dot_dimension_numbers<[1], [0], [0], [1], [0, 0, 1, 1], [], []>} : vector<8x8xbf16>, vector<8x8xbf16>, vector<8x8xf32> -> vector<8x8xf32>
    %c0_39 = arith.constant 0 : index
    %c24 = arith.constant 24 : index
    %112 = vector.load %arg10[%c0_39, %c24] : memref<16x32xf32, #tpu.memory_space<vmem>>, vector<8x8xf32>
    tpu.vector_store %arg10[%c0_39, %c24], %111 {strides = array<i32>} : memref<16x32xf32, #tpu.memory_space<vmem>>, vector<8x8xf32>,
    %c1 = arith.constant 1 : index
    %113 = memref.load %arg1[%c1] : memref<2xi32, #tpu.memory_space<smem>>
    %114 = vector.broadcast %113 : i32 to vector<8x8xi32>
    %115 = arith.cmpi slt, %32, %114 : vector<8x8xi32>
    %116 = vector.extract_strided_slice %31 {offsets = [8, 0], sizes = [8, 96], strides = [1, 1]} : vector<16x96xbf16> to vector<8x96xbf16>
    %117 = vector.extract_strided_slice %116 {offsets = [0, 0], sizes = [8, 8], strides = [1, 1]} : vector<8x96xbf16> to vector<8x8xbf16>
    %118 = vector.extract_strided_slice %116 {offsets = [0, 32], sizes = [8, 8], strides = [1, 1]} : vector<8x96xbf16> to vector<8x8xbf16>
    %119 = vector.extract_strided_slice %116 {offsets = [0, 64], sizes = [8, 8], strides = [1, 1]} : vector<8x96xbf16> to vector<8x8xbf16>
    %cst_40 = arith.constant dense<0.000000e+00> : vector<8x8xf32>
    %120 = tpu.matmul %117, %118, %cst_40 {dimension_numbers = #tpu.dot_dimension_numbers<[1], [1], [0], [0], [0, 0, 1, 0], [], []>} : vector<8x8xbf16>, vector<8x8xbf16>, vector<8x8xf32> -> vector<8x8xf32>
    %cst_41 = arith.constant -1.000000e+30 : f32
    %121 = vector.broadcast %cst_41 : f32 to vector<8x8xf32>
    %122 = arith.select %115, %120, %121 : vector<8x8xi1>, vector<8x8xf32>
    %cst_42 = arith.constant dense<0xFF800000> : vector<8xf32>
    %123 = vector.multi_reduction <maximumf>, %122, %cst_42 [1] : vector<8x8xf32> to vector<8xf32>
    %124 = vector.shape_cast %123 : vector<8xf32> to vector<8x1xf32>
    %125 = vector.broadcast %124 : vector<8x1xf32> to vector<8x8xf32>
    %126 = arith.subf %122, %125 : vector<8x8xf32>
    %127 = math.exp %126 : vector<8x8xf32>
    %cst_43 = arith.constant dense<0.000000e+00> : vector<8xf32>
    %128 = vector.multi_reduction <add>, %127, %cst_43 [1] : vector<8x8xf32> to vector<8xf32>
    %129 = vector.shape_cast %128 : vector<8xf32> to vector<8x1xf32>
    %130 = tpu.reciprocal %129 {approx = true} : vector<8x1xf32> -> vector<8x1xf32>
    %131 = vector.broadcast %130 : vector<8x1xf32> to vector<8x8xf32>
    %132 = arith.mulf %127, %131 : vector<8x8xf32>
    %133 = arith.truncf %132 : vector<8x8xf32> to vector<8x8xbf16>
    %cst_44 = arith.constant dense<0.000000e+00> : vector<8x8xf32>
    %134 = tpu.matmul %133, %119, %cst_44 {dimension_numbers = #tpu.dot_dimension_numbers<[1], [0], [0], [1], [0, 0, 1, 1], [], []>} : vector<8x8xbf16>, vector<8x8xbf16>, vector<8x8xf32> -> vector<8x8xf32>
    %c8_45 = arith.constant 8 : index
    %c0_46 = arith.constant 0 : index
    %135 = vector.load %arg10[%c8_45, %c0_46] : memref<16x32xf32, #tpu.memory_space<vmem>>, vector<8x8xf32>
    tpu.vector_store %arg10[%c8_45, %c0_46], %134 {strides = array<i32>} : memref<16x32xf32, #tpu.memory_space<vmem>>, vector<8x8xf32>,
    %136 = vector.extract_strided_slice %116 {offsets = [0, 8], sizes = [8, 8], strides = [1, 1]} : vector<8x96xbf16> to vector<8x8xbf16>
    %137 = vector.extract_strided_slice %116 {offsets = [0, 40], sizes = [8, 8], strides = [1, 1]} : vector<8x96xbf16> to vector<8x8xbf16>
    %138 = vector.extract_strided_slice %116 {offsets = [0, 72], sizes = [8, 8], strides = [1, 1]} : vector<8x96xbf16> to vector<8x8xbf16>
    %cst_47 = arith.constant dense<0.000000e+00> : vector<8x8xf32>
    %139 = tpu.matmul %136, %137, %cst_47 {dimension_numbers = #tpu.dot_dimension_numbers<[1], [1], [0], [0], [0, 0, 1, 0], [], []>} : vector<8x8xbf16>, vector<8x8xbf16>, vector<8x8xf32> -> vector<8x8xf32>
    %cst_48 = arith.constant -1.000000e+30 : f32
    %140 = vector.broadcast %cst_48 : f32 to vector<8x8xf32>
    %141 = arith.select %115, %139, %140 : vector<8x8xi1>, vector<8x8xf32>
    %cst_49 = arith.constant dense<0xFF800000> : vector<8xf32>
    %142 = vector.multi_reduction <maximumf>, %141, %cst_49 [1] : vector<8x8xf32> to vector<8xf32>
    %143 = vector.shape_cast %142 : vector<8xf32> to vector<8x1xf32>
    %144 = vector.broadcast %143 : vector<8x1xf32> to vector<8x8xf32>
    %145 = arith.subf %141, %144 : vector<8x8xf32>
    %146 = math.exp %145 : vector<8x8xf32>
    %cst_50 = arith.constant dense<0.000000e+00> : vector<8xf32>
    %147 = vector.multi_reduction <add>, %146, %cst_50 [1] : vector<8x8xf32> to vector<8xf32>
    %148 = vector.shape_cast %147 : vector<8xf32> to vector<8x1xf32>
    %149 = tpu.reciprocal %148 {approx = true} : vector<8x1xf32> -> vector<8x1xf32>
    %150 = vector.broadcast %149 : vector<8x1xf32> to vector<8x8xf32>
    %151 = arith.mulf %146, %150 : vector<8x8xf32>
    %152 = arith.truncf %151 : vector<8x8xf32> to vector<8x8xbf16>
    %cst_51 = arith.constant dense<0.000000e+00> : vector<8x8xf32>
    %153 = tpu.matmul %152, %138, %cst_51 {dimension_numbers = #tpu.dot_dimension_numbers<[1], [0], [0], [1], [0, 0, 1, 1], [], []>} : vector<8x8xbf16>, vector<8x8xbf16>, vector<8x8xf32> -> vector<8x8xf32>
    %c8_52 = arith.constant 8 : index
    %c8_53 = arith.constant 8 : index
    %154 = vector.load %arg10[%c8_52, %c8_53] : memref<16x32xf32, #tpu.memory_space<vmem>>, vector<8x8xf32>
    tpu.vector_store %arg10[%c8_52, %c8_53], %153 {strides = array<i32>} : memref<16x32xf32, #tpu.memory_space<vmem>>, vector<8x8xf32>,
    %155 = vector.extract_strided_slice %116 {offsets = [0, 16], sizes = [8, 8], strides = [1, 1]} : vector<8x96xbf16> to vector<8x8xbf16>
    %156 = vector.extract_strided_slice %116 {offsets = [0, 48], sizes = [8, 8], strides = [1, 1]} : vector<8x96xbf16> to vector<8x8xbf16>
    %157 = vector.extract_strided_slice %116 {offsets = [0, 80], sizes = [8, 8], strides = [1, 1]} : vector<8x96xbf16> to vector<8x8xbf16>
    %cst_54 = arith.constant dense<0.000000e+00> : vector<8x8xf32>
    %158 = tpu.matmul %155, %156, %cst_54 {dimension_numbers = #tpu.dot_dimension_numbers<[1], [1], [0], [0], [0, 0, 1, 0], [], []>} : vector<8x8xbf16>, vector<8x8xbf16>, vector<8x8xf32> -> vector<8x8xf32>
    %cst_55 = arith.constant -1.000000e+30 : f32
    %159 = vector.broadcast %cst_55 : f32 to vector<8x8xf32>
    %160 = arith.select %115, %158, %159 : vector<8x8xi1>, vector<8x8xf32>
    %cst_56 = arith.constant dense<0xFF800000> : vector<8xf32>
    %161 = vector.multi_reduction <maximumf>, %160, %cst_56 [1] : vector<8x8xf32> to vector<8xf32>
    %162 = vector.shape_cast %161 : vector<8xf32> to vector<8x1xf32>
    %163 = vector.broadcast %162 : vector<8x1xf32> to vector<8x8xf32>
    %164 = arith.subf %160, %163 : vector<8x8xf32>
    %165 = math.exp %164 : vector<8x8xf32>
    %cst_57 = arith.constant dense<0.000000e+00> : vector<8xf32>
    %166 = vector.multi_reduction <add>, %165, %cst_57 [1] : vector<8x8xf32> to vector<8xf32>
    %167 = vector.shape_cast %166 : vector<8xf32> to vector<8x1xf32>
    %168 = tpu.reciprocal %167 {approx = true} : vector<8x1xf32> -> vector<8x1xf32>
    %169 = vector.broadcast %168 : vector<8x1xf32> to vector<8x8xf32>
    %170 = arith.mulf %165, %169 : vector<8x8xf32>
    %171 = arith.truncf %170 : vector<8x8xf32> to vector<8x8xbf16>
    %cst_58 = arith.constant dense<0.000000e+00> : vector<8x8xf32>
    %172 = tpu.matmul %171, %157, %cst_58 {dimension_numbers = #tpu.dot_dimension_numbers<[1], [0], [0], [1], [0, 0, 1, 1], [], []>} : vector<8x8xbf16>, vector<8x8xbf16>, vector<8x8xf32> -> vector<8x8xf32>
    %c8_59 = arith.constant 8 : index
    %c16_60 = arith.constant 16 : index
    %173 = vector.load %arg10[%c8_59, %c16_60] : memref<16x32xf32, #tpu.memory_space<vmem>>, vector<8x8xf32>
    tpu.vector_store %arg10[%c8_59, %c16_60], %172 {strides = array<i32>} : memref<16x32xf32, #tpu.memory_space<vmem>>, vector<8x8xf32>,
    %174 = vector.extract_strided_slice %116 {offsets = [0, 24], sizes = [8, 8], strides = [1, 1]} : vector<8x96xbf16> to vector<8x8xbf16>
    %175 = vector.extract_strided_slice %116 {offsets = [0, 56], sizes = [8, 8], strides = [1, 1]} : vector<8x96xbf16> to vector<8x8xbf16>
    %176 = vector.extract_strided_slice %116 {offsets = [0, 88], sizes = [8, 8], strides = [1, 1]} : vector<8x96xbf16> to vector<8x8xbf16>
    %cst_61 = arith.constant dense<0.000000e+00> : vector<8x8xf32>
    %177 = tpu.matmul %174, %175, %cst_61 {dimension_numbers = #tpu.dot_dimension_numbers<[1], [1], [0], [0], [0, 0, 1, 0], [], []>} : vector<8x8xbf16>, vector<8x8xbf16>, vector<8x8xf32> -> vector<8x8xf32>
    %cst_62 = arith.constant -1.000000e+30 : f32
    %178 = vector.broadcast %cst_62 : f32 to vector<8x8xf32>
    %179 = arith.select %115, %177, %178 : vector<8x8xi1>, vector<8x8xf32>
    %cst_63 = arith.constant dense<0xFF800000> : vector<8xf32>
    %180 = vector.multi_reduction <maximumf>, %179, %cst_63 [1] : vector<8x8xf32> to vector<8xf32>
    %181 = vector.shape_cast %180 : vector<8xf32> to vector<8x1xf32>
    %182 = vector.broadcast %181 : vector<8x1xf32> to vector<8x8xf32>
    %183 = arith.subf %179, %182 : vector<8x8xf32>
    %184 = math.exp %183 : vector<8x8xf32>
    %cst_64 = arith.constant dense<0.000000e+00> : vector<8xf32>
    %185 = vector.multi_reduction <add>, %184, %cst_64 [1] : vector<8x8xf32> to vector<8xf32>
    %186 = vector.shape_cast %185 : vector<8xf32> to vector<8x1xf32>
    %187 = tpu.reciprocal %186 {approx = true} : vector<8x1xf32> -> vector<8x1xf32>
    %188 = vector.broadcast %187 : vector<8x1xf32> to vector<8x8xf32>
    %189 = arith.mulf %184, %188 : vector<8x8xf32>
    %190 = arith.truncf %189 : vector<8x8xf32> to vector<8x8xbf16>
    %cst_65 = arith.constant dense<0.000000e+00> : vector<8x8xf32>
    %191 = tpu.matmul %190, %176, %cst_65 {dimension_numbers = #tpu.dot_dimension_numbers<[1], [0], [0], [1], [0, 0, 1, 1], [], []>} : vector<8x8xbf16>, vector<8x8xbf16>, vector<8x8xf32> -> vector<8x8xf32>
    %c8_66 = arith.constant 8 : index
    %c24_67 = arith.constant 24 : index
    %192 = vector.load %arg10[%c8_66, %c24_67] : memref<16x32xf32, #tpu.memory_space<vmem>>, vector<8x8xf32>
    tpu.vector_store %arg10[%c8_66, %c24_67], %191 {strides = array<i32>} : memref<16x32xf32, #tpu.memory_space<vmem>>, vector<8x8xf32>,
    %c0_68 = arith.constant 0 : index
    %c0_69 = arith.constant 0 : index
    %193 = vector.load %arg10[%c0_68, %c0_69] : memref<16x32xf32, #tpu.memory_space<vmem>>, vector<16x32xf32>
    %194 = arith.truncf %193 : vector<16x32xf32> to vector<16x32xbf16>
    %c0_70 = arith.constant 0 : index
    %c0_71 = arith.constant 0 : index
    %195 = vector.load %arg7[%c0_70, %c0_71] : memref<32x32xbf16, #tpu.memory_space<vmem>>, vector<32x32xbf16>
    %cst_72 = arith.constant dense<0.000000e+00> : vector<16x32xf32>
    %196 = tpu.matmul %194, %195, %cst_72 {dimension_numbers = #tpu.dot_dimension_numbers<[1], [0], [0], [1], [0, 0, 1, 1], [], []>} : vector<16x32xbf16>, vector<32x32xbf16>, vector<16x32xf32> -> vector<16x32xf32>
    %c0_73 = arith.constant 0 : index
    %c0_74 = arith.constant 0 : index
    %197 = vector.load %arg8[%c0_73, %c0_74] : memref<1x32xf32, #tpu.memory_space<vmem>>, vector<1x32xf32>
    %198 = vector.broadcast %197 : vector<1x32xf32> to vector<16x32xf32>
    %199 = arith.addf %196, %198 : vector<16x32xf32>
    %c0_75 = arith.constant 0 : index
    %c0_76 = arith.constant 0 : index
    %200 = vector.load %arg9[%c0_75, %c0_76] : memref<16x32xf32, #tpu.memory_space<vmem>>, vector<16x32xf32>
    tpu.vector_store %arg9[%c0_75, %c0_76], %199 {strides = array<i32>} : memref<16x32xf32, #tpu.memory_space<vmem>>, vector<16x32xf32>,
    return
  }
  func.func @transform_0(%arg0: i32, %arg1: memref<2xi32, #tpu.memory_space<smem>>) -> (i32, i32) {
    %c0_i32 = arith.constant 0 : i32
    %c0_i32_0 = arith.constant 0 : i32
    %c0_i32_1 = arith.constant 0 : i32
    return %c0_i32, %c0_i32_0 : i32, i32
  }
  func.func @transform_1(%arg0: i32, %arg1: memref<2xi32, #tpu.memory_space<smem>>) -> (i32, i32) {
    %c0_i32 = arith.constant 0 : i32
    %c0_i32_0 = arith.constant 0 : i32
    %c0_i32_1 = arith.constant 0 : i32
    return %c0_i32, %c0_i32_0 : i32, i32
  }
  func.func @transform_2(%arg0: i32, %arg1: memref<2xi32, #tpu.memory_space<smem>>) -> (i32, i32) {
    %c0_i32 = arith.constant 0 : i32
    %c0_i32_0 = arith.constant 0 : i32
    %c0_i32_1 = arith.constant 0 : i32
    return %c0_i32, %c0_i32_0 : i32, i32
  }
  func.func @transform_3(%arg0: i32, %arg1: memref<2xi32, #tpu.memory_space<smem>>) -> (i32, i32) {
    %c0_i32 = arith.constant 0 : i32
    %c0_i32_0 = arith.constant 0 : i32
    %c0_i32_1 = arith.constant 0 : i32
    return %c0_i32, %c0_i32_0 : i32, i32
  }
  func.func @transform_4(%arg0: i32, %arg1: memref<2xi32, #tpu.memory_space<smem>>) -> (i32, i32) {
    %c0_i32 = arith.constant 0 : i32
    %c0_i32_0 = arith.constant 0 : i32
    %c0_i32_1 = arith.constant 0 : i32
    return %c0_i32, %c0_i32_0 : i32, i32
  }
  func.func @transform_5(%arg0: i32, %arg1: memref<2xi32, #tpu.memory_space<smem>>) -> (i32, i32) {
    %c0_i32 = arith.constant 0 : i32
    %c0_i32_0 = arith.constant 0 : i32
    %c0_i32_1 = arith.constant 0 : i32
    return %c0_i32, %c0_i32_0 : i32, i32
  }
  func.func @transform_6(%arg0: i32, %arg1: memref<2xi32, #tpu.memory_space<smem>>) -> (i32, i32) {
    %c0_i32 = arith.constant 0 : i32
    %c0_i32_0 = arith.constant 0 : i32
    %c0_i32_1 = arith.constant 0 : i32
    return %c0_i32, %c0_i32_0 : i32, i32
  }
  func.func @transform_7(%arg0: i32, %arg1: memref<2xi32, #tpu.memory_space<smem>>) -> (i32, i32) {
    %c0_i32 = arith.constant 0 : i32
    %c0_i32_0 = arith.constant 0 : i32
    %c0_i32_1 = arith.constant 0 : i32
    return %c0_i32, %c0_i32_0 : i32, i32
  }
}

</mosaic_0001>

<llo_original>
// kernel: tpu_custom_call.1
$region0: #{tpu_custom_call.1}
  #allocation0 [shape = 'u32[]', space=smem, size = 0x4, offset = 0x4, fixed_abs, tag = 'smem constant byte address 0x4 - core index']
  #allocation1 [shape = 'u32[72,128]{1,0:T(1,128)}', space=vmem, size = 0x9000, scoped, tag = 'internal scratch']
  #allocation2 [shape = 'f32[16,32]{1,0:T(8,128)}', space=vmem, size = 0x2000, scoped, tag = 'scratch operand']
  #allocation3 [shape = 's32[1]{0}', space=sflag, size = 0x4, scoped, tag = 'scoped memory for tpu_custom_call.1']
  #allocation4 [shape = 'u8[512]{0}', space=smem, size = 0x200, scoped, tag = 'prefetched SMEM operand 0']
  %s0 = inlined_call_operand.hbm [shape: s32[2], index: 0, kind: input, shape index: {}]
  %s1 = inlined_call_operand.hbm [shape: f32[16,32], index: 1, kind: input, shape index: {}]
  %s2 = inlined_call_operand.vmem [shape: f32[1,32], index: 2, kind: input, shape index: {}]
  %s3 = inlined_call_operand.vmem [shape: f32[1,32], index: 3, kind: input, shape index: {}]
  %s4 = inlined_call_operand.hbm [shape: bf16[32,96], index: 4, kind: input, shape index: {}]
  %s5 = inlined_call_operand.vmem [shape: f32[1,96], index: 5, kind: input, shape index: {}]
  %s6 = inlined_call_operand.hbm [shape: bf16[32,32], index: 6, kind: input, shape index: {}]
  %s7 = inlined_call_operand.vmem [shape: f32[1,32], index: 7, kind: input, shape index: {}]
  %s8 = inlined_call_operand.hbm [shape: f32[16,32], index: 8, kind: output, shape index: {}]
  %s9 = sld [smem:[#allocation0]]
  $region50: #{tpu_custom_call.1} parent=0
    _
  %s11 = ssub.s32 1, %s9
  %s12 = scalar_select 0, %s11, %s9
  %s14 = sshll.u32 %s0, 4
  %s15 = int_to_ptr.hbm [resolvable:$true] %s14
  %17 = dma.hbm_to_smem %s15, 16, [#allocation4], [#allocation3]
  %19 = dma.done [#allocation3], 16
  %20 = sfence
  $region1: #{tpu_custom_call.1} parent=0
    #allocation5 [shape = 'u8[8192]{0}', space=vmem, size = 0x2000, scoped, tag = 'input window, operand 1, single buffered']
    #allocation6 [shape = 's32[1]{0}', space=sflag, size = 0x4, scoped, tag = 'scoped memory for tpu_custom_call.1']
    #allocation7 [shape = 's32[1]{0}', space=sflag, size = 0x4, scoped, tag = 'scoped memory for tpu_custom_call.1']
    #allocation8 [shape = 'u8[8192]{0}', space=vmem, size = 0x2000, scoped, tag = 'input window, operand 4, single buffered']
    #allocation9 [shape = 's32[1]{0}', space=sflag, size = 0x4, scoped, tag = 'scoped memory for tpu_custom_call.1']
    #allocation10 [shape = 'u8[8192]{0}', space=vmem, size = 0x2000, scoped, tag = 'input window, operand 6, single buffered']
    #allocation11 [shape = 'u8[8192]{0}', space=vmem, size = 0x2000, scoped, tag = 'output window, operand 0, single buffered']
    %21 = vsyncpa [#allocation6], 0
    %22 = vsyncpa [#allocation9], 0
    %23 = vsyncpa [#allocation7], 0
    // Predicated region
    $region2: #{tpu_custom_call.1} parent=1 // pred_check
      _
    $region3: #{tpu_custom_call.1} parent=1 // pred_check_branch
      %25 = sbr.rel (0) target = $region5
    $region4: #{tpu_custom_call.1} parent=1 // pred_region
      %27 = vsyncadd [#allocation6], 0
      %s28 = sshll.u32 %s1, 4
      %s29 = int_to_ptr.hbm [resolvable:$true] %s28
      %s30 = sshll.u32 [#allocation5], 4
      %s31 = int_to_ptr.vmem [resolvable:$true] %s30
      %36 = dma.hbm_to_vmem [thread:$0]  %s29, 256, %s31, [#allocation6], 128, 128, 8
    $region5: #{tpu_custom_call.1} parent=1 // pred_fallthru
      _
    // Predicated region
    $region6: #{tpu_custom_call.1} parent=1 // pred_check
      _
    $region7: #{tpu_custom_call.1} parent=1 // pred_check_branch
      %38 = sbr.rel (0) target = $region9
    $region8: #{tpu_custom_call.1} parent=1 // pred_region
      _
    $region9: #{tpu_custom_call.1} parent=1 // pred_fallthru
      _
    // Predicated region
    $region10: #{tpu_custom_call.1} parent=1 // pred_check
      _
    $region11: #{tpu_custom_call.1} parent=1 // pred_check_branch
      %40 = sbr.rel (0) target = $region13
    $region12: #{tpu_custom_call.1} parent=1 // pred_region
      _
    $region13: #{tpu_custom_call.1} parent=1 // pred_fallthru
      _
    // Predicated region
    $region14: #{tpu_custom_call.1} parent=1 // pred_check
      _
    $region15: #{tpu_custom_call.1} parent=1 // pred_check_branch
      %42 = sbr.rel (0) target = $region17
    $region16: #{tpu_custom_call.1} parent=1 // pred_region
      %44 = vsyncadd [#allocation9], 0
      %s45 = sshll.u32 %s4, 4
      %s46 = int_to_ptr.hbm [resolvable:$true] %s45
      %s47 = sshll.u32 [#allocation8], 4
      %s48 = int_to_ptr.vmem [resolvable:$true] %s47
      %53 = dma.hbm_to_vmem [thread:$0]  %s46, 256, %s48, [#allocation9], 64, 64, 4
    $region17: #{tpu_custom_call.1} parent=1 // pred_fallthru
      _
    // Predicated region
    $region18: #{tpu_custom_call.1} parent=1 // pred_check
      _
    $region19: #{tpu_custom_call.1} parent=1 // pred_check_branch
      %55 = sbr.rel (0) target = $region21
    $region20: #{tpu_custom_call.1} parent=1 // pred_region
      _
    $region21: #{tpu_custom_call.1} parent=1 // pred_fallthru
      _
    // Predicated region
    $region22: #{tpu_custom_call.1} parent=1 // pred_check
      _
    $region23: #{tpu_custom_call.1} parent=1 // pred_check_branch
      %57 = sbr.rel (0) target = $region25
    $region24: #{tpu_custom_call.1} parent=1 // pred_region
      %59 = vsyncadd [#allocation9], 0
      %s60 = sshll.u32 %s6, 4
      %s61 = int_to_ptr.hbm [resolvable:$true] %s60
      %s62 = sshll.u32 [#allocation10], 4
      %s63 = int_to_ptr.vmem [resolvable:$true] %s62
      %68 = dma.hbm_to_vmem [thread:$0]  %s61, 256, %s63, [#allocation9], 64, 64, 4
    $region25: #{tpu_custom_call.1} parent=1 // pred_fallthru
      _
    // Predicated region
    $region26: #{tpu_custom_call.1} parent=1 // pred_check
      _
    $region27: #{tpu_custom_call.1} parent=1 // pred_check_branch
      %70 = sbr.rel (0) target = $region29
    $region28: #{tpu_custom_call.1} parent=1 // pred_region
      _
    $region29: #{tpu_custom_call.1} parent=1 // pred_fallthru
      _
    // Predicated region
    $region30: #{tpu_custom_call.1} parent=1 // pred_check
      _
    $region31: #{tpu_custom_call.1} parent=1 // pred_check_branch
      %72 = sbr.rel (0) target = $region33
    $region32: #{tpu_custom_call.1} parent=1 // pred_region
      %74 = dma.done [#allocation6], 256
    $region33: #{tpu_custom_call.1} parent=1 // pred_fallthru
      _
    // Predicated region
    $region34: #{tpu_custom_call.1} parent=1 // pred_check
      _
    $region35: #{tpu_custom_call.1} parent=1 // pred_check_branch
      %76 = sbr.rel (0) target = $region37
    $region36: #{tpu_custom_call.1} parent=1 // pred_region
      %78 = dma.done [#allocation9], 256
    $region37: #{tpu_custom_call.1} parent=1 // pred_fallthru
      _
    // Predicated region
    $region38: #{tpu_custom_call.1} parent=1 // pred_check
      _
    $region39: #{tpu_custom_call.1} parent=1 // pred_check_branch
      %80 = sbr.rel (0) target = $region41
    $region40: #{tpu_custom_call.1} parent=1 // pred_region
      %82 = dma.done [#allocation9], 256
    $region41: #{tpu_custom_call.1} parent=1 // pred_fallthru
      _
    %v84 = vld [vmem:[#allocation5] sm:$0xff]
    %v85 = vld [vmem:[#allocation5 + $0x8] sm:$0xff]
    %vm86 = vcmask 261120
    %v87 = vsel %vm86, %v84, 0.0
    %88 = vadd.xlane.f32.xlu0 %v87
    %v89 = vpop.xlane.xlu0 %88
    %v90 = vsel %vm86, %v85, 0.0
    %91 = vadd.xlane.f32.xlu0 %v90
    %v92 = vpop.xlane.xlu0 %91
    %v93 = vrcp.pop 32.0
    %v94 = vmul.f32 32.0, %v93
    %v95 = vsub.f32 1.0, %v94
    %v96 = vmul.f32 %v93, %v95
    %v97 = vadd.f32 %v93, %v96
    %vm98 = vweird.f32 %v93
    %v99 = vsel %vm98, %v93, %v97
    %v100 = vmul.f32 %v89, %v99
    %v101 = vmul.f32 %v92, %v99
    %v102 = vsub.f32 %v84, %v100
    %v103 = vsub.f32 %v85, %v101
    %v104 = vmul.f32 %v102, %v102
    %v105 = vmul.f32 %v103, %v103
    %v106 = vsel %vm86, %v104, 0.0
    %107 = vadd.xlane.f32.xlu0 %v106
    %v108 = vpop.xlane.xlu0 %107
    %v109 = vsel %vm86, %v105, 0.0
    %110 = vadd.xlane.f32.xlu0 %v109
    %v111 = vpop.xlane.xlu0 %110
    %v112 = vmul.f32 %v108, %v99
    %v113 = vmul.f32 %v111, %v99
    %v114 = vadd.f32 %v112, 1e-05
    %v115 = vadd.f32 %v113, 1e-05
    %v116 = vrsqrt.pop %v114
    %v117 = vmul.f32 %v116, %v114
    %v118 = vmul.f32 %v117, %v116
    %v119 = vmul.f32 0.5, %v118
    %v120 = vsub.f32 1.5, %v119
    %v121 = vmul.f32 %v116, %v120
    %vm122 = vweird.f32 %v114
    %vm123 = vweird.f32 %v116
    %vm124 = vmor %vm122, %vm123
    %v125 = vsel %vm124, %v116, %v121
    %v126 = vrsqrt.pop %v115
    %v127 = vmul.f32 %v126, %v115
    %v128 = vmul.f32 %v127, %v126
    %v129 = vmul.f32 0.5, %v128
    %v130 = vsub.f32 1.5, %v129
    %v131 = vmul.f32 %v126, %v130
    %vm132 = vweird.f32 %v115
    %vm133 = vweird.f32 %v126
    %vm134 = vmor %vm132, %vm133
    %v135 = vsel %vm134, %v126, %v131
    %v136 = vmul.f32 %v102, %v125
    %v137 = vmul.f32 %v103, %v135
    %v138 = vld [vmem:[%s2] sm:$0x1]
    %v140 = vperm.slane %v138, 0
    %v142 = vmul.f32 %v136, %v140
    %v143 = vmul.f32 %v137, %v140
    %v144 = vld [vmem:[%s3] sm:$0x1]
    %v146 = vperm.slane %v144, 0
    %v148 = vadd.f32 %v142, %v146
    %v149 = vadd.f32 %v143, %v146
    %v150 = vpack.c.bf16 %v149, %v148
    %v151 = vld [vmem:[#allocation8] sm:$0xf]
    %v152 = vld [vmem:[#allocation8 + $0x4] sm:$0xf]
    %v153 = vld [vmem:[#allocation8 + $0x8] sm:$0xf]
    %v154 = vld [vmem:[#allocation8 + $0xc] sm:$0xf]
    %v155 = vld [vmem:[%s5] sm:$0x1]
    %v157 = vperm.slane %v155, 0
    %v163 = vunpack.c.l.b16 %v151
    %v164 = vunpack.c.l.b16 %v152
    %v165 = vunpack.c.l.b16 %v153
    %v166 = vunpack.c.l.b16 %v154
    %v167 = vpack.c.b16 %v164, %v163
    %v168 = vpack.c.b16 %v166, %v165
    %v172 = vsel %vm86, %v150, 0
    %174 = vmatpush.bf16.msra.mxu0 0
    %175 = vmatpush.bf16.msra.mxu0 0
    %176 = vmatpush.bf16.msra.mxu0 0
    %177 = vmatpush.bf16.msra.mxu0 0
    %178 = vmatpush.bf16.msra.mxu0 0
    %179 = vmatpush.bf16.msra.mxu0 0
    %180 = vmatpush.bf16.msra.mxu0 %v168
    %181 = vmatpush.bf16.msra.mxu0 %v167
    %182 = vmatmul.bf16.gmra.mxu0 %v172
    %v183 = vpop.f32.mrf.mxu0
    %v184 = vadd.f32 %v157, %v183
    %v185 = vpop.f32.mrf.mxu0
    %v186 = vadd.f32 %v157, %v185
    %187 = vdwg.mxu0
    %v188 = vpack.c.bf16 %v184, %v184
    %v189 = vpack.c.bf16 %v186, %v186
    %v190 = vlaneseq
    %v191 = vand.u32 %v190, 127
    %s192 = sld [smem:[#allocation4]]
    %v193 = vstv %s192
    %vm194 = vcmp.lt.s32.totalorder %v191, %v193
    %v196 = vunpack.c.l.b16 %v188
    %v197 = vpack.c.b16 %v196, %v196
    %198 = vrot.lane.b32.xlu0 %v197, 96
    %v199 = vpop.permute.xlu0 %198
    %vm200 = vcmask 64512
    %v202 = vsel %vm200, %v188, 0
    %v205 = vsel %vm200, %v199, 0
    %207 = vmatpush.bf16.xpose.msra.mxu0 0
    %208 = vmatpush.bf16.xpose.msra.mxu0 0
    %209 = vmatpush.bf16.xpose.msra.mxu0 0
    %210 = vmatpush.bf16.xpose.msra.mxu0 0
    %211 = vmatpush.bf16.xpose.msra.mxu0 0
    %212 = vmatpush.bf16.xpose.msra.mxu0 0
    %213 = vmatpush.bf16.xpose.msra.mxu0 0
    %214 = vmatpush.bf16.xpose.msra.mxu0 %v205
    %215 = vmatmul.bf16.gmra.mxu0 %v202
    %v216 = vpop.f32.mrf.mxu0
    %v217 = vadd.f32 0.0, %v216
    %v218 = vpop.f32.mrf.mxu0
    %219 = vdwg.mxu0
    %v220 = vsel %vm194, %v217, -1e+30
    %v221 = vsel %vm200, %v220, -inf
    %222 = vmax.xlane.f32.xlu0 %v221
    %v223 = vpop.xlane.xlu0 %222
    %v224 = vsub.f32 %v220, %v223
    %v225 = vmul.f32 %v224, 1.442695
    %v226 = vpow.pop %v225
    %v227 = vsel %vm200, %v226, 0.0
    %228 = vadd.xlane.f32.xlu0 %v227
    %v229 = vpop.xlane.xlu0 %228
    %v230 = vrcp.pop %v229
    %v231 = vmul.f32 %v226, %v230
    %v232 = vpack.c.bf16 %v231, %v231
    %233 = vrot.lane.b32.xlu0 %v197, 64
    %v234 = vpop.permute.xlu0 %233
    %v236 = vsel %vm200, %v232, 0
    %vm238 = vcmask 1043456
    %v240 = vsel %vm238, %v234, 0
    %242 = vmatpush.bf16.msra.mxu0 0
    %243 = vmatpush.bf16.msra.mxu0 0
    %244 = vmatpush.bf16.msra.mxu0 0
    %245 = vmatpush.bf16.msra.mxu0 0
    %246 = vmatpush.bf16.msra.mxu0 0
    %247 = vmatpush.bf16.msra.mxu0 0
    %248 = vmatpush.bf16.msra.mxu0 0
    %249 = vmatpush.bf16.msra.mxu0 %v240
    %250 = vmatmul.bf16.gmra.mxu0 %v236
    %v251 = vpop.f32.mrf.mxu0
    %v252 = vadd.f32 0.0, %v251
    %v253 = vpop.f32.mrf.mxu0
    %254 = vdwg.mxu0
    %255 = vst.msk [vmem:[#allocation2] sm:$0xff] %vm200, %v252
    %256 = vrot.lane.b32.xlu0 %v197, 120
    %v257 = vpop.permute.xlu0 %256
    %258 = vrot.lane.b32.xlu0 %v197, 88
    %v259 = vpop.permute.xlu0 %258
    %v261 = vsel %vm200, %v257, 0
    %v264 = vsel %vm200, %v259, 0
    %266 = vmatpush.bf16.xpose.msra.mxu0 0
    %267 = vmatpush.bf16.xpose.msra.mxu0 0
    %268 = vmatpush.bf16.xpose.msra.mxu0 0
    %269 = vmatpush.bf16.xpose.msra.mxu0 0
    %270 = vmatpush.bf16.xpose.msra.mxu0 0
    %271 = vmatpush.bf16.xpose.msra.mxu0 0
    %272 = vmatpush.bf16.xpose.msra.mxu0 0
    %273 = vmatpush.bf16.xpose.msra.mxu0 %v264
    %274 = vmatmul.bf16.gmra.mxu0 %v261
    %v275 = vpop.f32.mrf.mxu0
    %v276 = vadd.f32 0.0, %v275
    %v277 = vpop.f32.mrf.mxu0
    %278 = vdwg.mxu0
    %v279 = vsel %vm194, %v276, -1e+30
    %v280 = vsel %vm200, %v279, -inf
    %281 = vmax.xlane.f32.xlu0 %v280
    %v282 = vpop.xlane.xlu0 %281
    %v283 = vsub.f32 %v279, %v282
    %v284 = vmul.f32 %v283, 1.442695
    %v285 = vpow.pop %v284
    %v286 = vsel %vm200, %v285, 0.0
    %287 = vadd.xlane.f32.xlu0 %v286
    %v288 = vpop.xlane.xlu0 %287
    %v289 = vrcp.pop %v288
    %v290 = vmul.f32 %v285, %v289
    %v291 = vpack.c.bf16 %v290, %v290
    %292 = vrot.lane.b32.xlu0 %v197, 56
    %v293 = vpop.permute.xlu0 %292
    %v295 = vsel %vm200, %v291, 0
    %v298 = vsel %vm238, %v293, 0
    %300 = vmatpush.bf16.msra.mxu0 0
    %301 = vmatpush.bf16.msra.mxu0 0
    %302 = vmatpush.bf16.msra.mxu0 0
    %303 = vmatpush.bf16.msra.mxu0 0
    %304 = vmatpush.bf16.msra.mxu0 0
    %305 = vmatpush.bf16.msra.mxu0 0
    %306 = vmatpush.bf16.msra.mxu0 0
    %307 = vmatpush.bf16.msra.mxu0 %v298
    %308 = vmatmul.bf16.gmra.mxu0 %v295
    %v309 = vpop.f32.mrf.mxu0
    %v310 = vadd.f32 0.0, %v309
    %v311 = vpop.f32.mrf.mxu0
    %312 = vdwg.mxu0
    %314 = vrot.lane.b32.xlu0 %v310, 8
    %v315 = vpop.permute.xlu0 %314
    %vm317 = vcmask 130112
    %318 = vst.msk [vmem:[#allocation2] sm:$0xff] %vm317, %v315
    %319 = vrot.lane.b32.xlu0 %v197, 112
    %v320 = vpop.permute.xlu0 %319
    %321 = vrot.lane.b32.xlu0 %v197, 80
    %v322 = vpop.permute.xlu0 %321
    %v324 = vsel %vm200, %v320, 0
    %v327 = vsel %vm200, %v322, 0
    %329 = vmatpush.bf16.xpose.msra.mxu0 0
    %330 = vmatpush.bf16.xpose.msra.mxu0 0
    %331 = vmatpush.bf16.xpose.msra.mxu0 0
    %332 = vmatpush.bf16.xpose.msra.mxu0 0
    %333 = vmatpush.bf16.xpose.msra.mxu0 0
    %334 = vmatpush.bf16.xpose.msra.mxu0 0
    %335 = vmatpush.bf16.xpose.msra.mxu0 0
    %336 = vmatpush.bf16.xpose.msra.mxu0 %v327
    %337 = vmatmul.bf16.gmra.mxu0 %v324
    %v338 = vpop.f32.mrf.mxu0
    %v339 = vadd.f32 0.0, %v338
    %v340 = vpop.f32.mrf.mxu0
    %341 = vdwg.mxu0
    %v342 = vsel %vm194, %v339, -1e+30
    %v343 = vsel %vm200, %v342, -inf
    %344 = vmax.xlane.f32.xlu0 %v343
    %v345 = vpop.xlane.xlu0 %344
    %v346 = vsub.f32 %v342, %v345
    %v347 = vmul.f32 %v346, 1.442695
    %v348 = vpow.pop %v347
    %v349 = vsel %vm200, %v348, 0.0
    %350 = vadd.xlane.f32.xlu0 %v349
    %v351 = vpop.xlane.xlu0 %350
    %v352 = vrcp.pop %v351
    %v353 = vmul.f32 %v348, %v352
    %v354 = vpack.c.bf16 %v353, %v353
    %355 = vrot.lane.b32.xlu0 %v197, 48
    %v356 = vpop.permute.xlu0 %355
    %v358 = vsel %vm200, %v354, 0
    %v361 = vsel %vm238, %v356, 0
    %363 = vmatpush.bf16.msra.mxu0 0
    %364 = vmatpush.bf16.msra.mxu0 0
    %365 = vmatpush.bf16.msra.mxu0 0
    %366 = vmatpush.bf16.msra.mxu0 0
    %367 = vmatpush.bf16.msra.mxu0 0
    %368 = vmatpush.bf16.msra.mxu0 0
    %369 = vmatpush.bf16.msra.mxu0 0
    %370 = vmatpush.bf16.msra.mxu0 %v361
    %371 = vmatmul.bf16.gmra.mxu0 %v358
    %v372 = vpop.f32.mrf.mxu0
    %v373 = vadd.f32 0.0, %v372
    %v374 = vpop.f32.mrf.mxu0
    %375 = vdwg.mxu0
    %377 = vrot.lane.b32.xlu0 %v373, 16
    %v378 = vpop.permute.xlu0 %377
    %vm380 = vcmask 195712
    %381 = vst.msk [vmem:[#allocation2] sm:$0xff] %vm380, %v378
    %382 = vrot.lane.b32.xlu0 %v197, 104
    %v383 = vpop.permute.xlu0 %382
    %384 = vrot.lane.b32.xlu0 %v197, 72
    %v385 = vpop.permute.xlu0 %384
    %v387 = vsel %vm200, %v383, 0
    %v390 = vsel %vm200, %v385, 0
    %392 = vmatpush.bf16.xpose.msra.mxu0 0
    %393 = vmatpush.bf16.xpose.msra.mxu0 0
    %394 = vmatpush.bf16.xpose.msra.mxu0 0
    %395 = vmatpush.bf16.xpose.msra.mxu0 0
    %396 = vmatpush.bf16.xpose.msra.mxu0 0
    %397 = vmatpush.bf16.xpose.msra.mxu0 0
    %398 = vmatpush.bf16.xpose.msra.mxu0 0
    %399 = vmatpush.bf16.xpose.msra.mxu0 %v390
    %400 = vmatmul.bf16.gmra.mxu0 %v387
    %v401 = vpop.f32.mrf.mxu0
    %v402 = vadd.f32 0.0, %v401
    %v403 = vpop.f32.mrf.mxu0
    %404 = vdwg.mxu0
    %v405 = vsel %vm194, %v402, -1e+30
    %v406 = vsel %vm200, %v405, -inf
    %407 = vmax.xlane.f32.xlu0 %v406
    %v408 = vpop.xlane.xlu0 %407
    %v409 = vsub.f32 %v405, %v408
    %v410 = vmul.f32 %v409, 1.442695
    %v411 = vpow.pop %v410
    %v412 = vsel %vm200, %v411, 0.0
    %413 = vadd.xlane.f32.xlu0 %v412
    %v414 = vpop.xlane.xlu0 %413
    %v415 = vrcp.pop %v414
    %v416 = vmul.f32 %v411, %v415
    %v417 = vpack.c.bf16 %v416, %v416
    %418 = vrot.lane.b32.xlu0 %v197, 40
    %v419 = vpop.permute.xlu0 %418
    %v421 = vsel %vm200, %v417, 0
    %v424 = vsel %vm238, %v419, 0
    %426 = vmatpush.bf16.msra.mxu0 0
    %427 = vmatpush.bf16.msra.mxu0 0
    %428 = vmatpush.bf16.msra.mxu0 0
    %429 = vmatpush.bf16.msra.mxu0 0
    %430 = vmatpush.bf16.msra.mxu0 0
    %431 = vmatpush.bf16.msra.mxu0 0
    %432 = vmatpush.bf16.msra.mxu0 0
    %433 = vmatpush.bf16.msra.mxu0 %v424
    %434 = vmatmul.bf16.gmra.mxu0 %v421
    %v435 = vpop.f32.mrf.mxu0
    %v436 = vadd.f32 0.0, %v435
    %v437 = vpop.f32.mrf.mxu0
    %438 = vdwg.mxu0
    %440 = vrot.lane.b32.xlu0 %v436, 24
    %v441 = vpop.permute.xlu0 %440
    %vm443 = vcmask 261312
    %444 = vst.msk [vmem:[#allocation2] sm:$0xff] %vm443, %v441
    %s445 = sld [smem:[#allocation4 + $0x1]]
    %v446 = vstv %s445
    %vm447 = vcmp.lt.s32.totalorder %v191, %v446
    %v449 = vunpack.c.l.b16 %v189
    %v450 = vpack.c.b16 %v449, %v449
    %451 = vrot.lane.b32.xlu0 %v450, 96
    %v452 = vpop.permute.xlu0 %451
    %v454 = vsel %vm200, %v189, 0
    %v457 = vsel %vm200, %v452, 0
    %459 = vmatpush.bf16.xpose.msra.mxu0 0
    %460 = vmatpush.bf16.xpose.msra.mxu0 0
    %461 = vmatpush.bf16.xpose.msra.mxu0 0
    %462 = vmatpush.bf16.xpose.msra.mxu0 0
    %463 = vmatpush.bf16.xpose.msra.mxu0 0
    %464 = vmatpush.bf16.xpose.msra.mxu0 0
    %465 = vmatpush.bf16.xpose.msra.mxu0 0
    %466 = vmatpush.bf16.xpose.msra.mxu0 %v457
    %467 = vmatmul.bf16.gmra.mxu0 %v454
    %v468 = vpop.f32.mrf.mxu0
    %v469 = vadd.f32 0.0, %v468
    %v470 = vpop.f32.mrf.mxu0
    %471 = vdwg.mxu0
    %v472 = vsel %vm447, %v469, -1e+30
    %v473 = vsel %vm200, %v472, -inf
    %474 = vmax.xlane.f32.xlu0 %v473
    %v475 = vpop.xlane.xlu0 %474
    %v476 = vsub.f32 %v472, %v475
    %v477 = vmul.f32 %v476, 1.442695
    %v478 = vpow.pop %v477
    %v479 = vsel %vm200, %v478, 0.0
    %480 = vadd.xlane.f32.xlu0 %v479
    %v481 = vpop.xlane.xlu0 %480
    %v482 = vrcp.pop %v481
    %v483 = vmul.f32 %v478, %v482
    %v484 = vpack.c.bf16 %v483, %v483
    %485 = vrot.lane.b32.xlu0 %v450, 64
    %v486 = vpop.permute.xlu0 %485
    %v488 = vsel %vm200, %v484, 0
    %v491 = vsel %vm238, %v486, 0
    %493 = vmatpush.bf16.msra.mxu0 0
    %494 = vmatpush.bf16.msra.mxu0 0
    %495 = vmatpush.bf16.msra.mxu0 0
    %496 = vmatpush.bf16.msra.mxu0 0
    %497 = vmatpush.bf16.msra.mxu0 0
    %498 = vmatpush.bf16.msra.mxu0 0
    %499 = vmatpush.bf16.msra.mxu0 0
    %500 = vmatpush.bf16.msra.mxu0 %v491
    %501 = vmatmul.bf16.gmra.mxu0 %v488
    %v502 = vpop.f32.mrf.mxu0
    %v503 = vadd.f32 0.0, %v502
    %v504 = vpop.f32.mrf.mxu0
    %505 = vdwg.mxu0
    %506 = vst.msk [vmem:[#allocation2 + $0x8] sm:$0xff] %vm200, %v503
    %507 = vrot.lane.b32.xlu0 %v450, 120
    %v508 = vpop.permute.xlu0 %507
    %509 = vrot.lane.b32.xlu0 %v450, 88
    %v510 = vpop.permute.xlu0 %509
    %v512 = vsel %vm200, %v508, 0
    %v515 = vsel %vm200, %v510, 0
    %517 = vmatpush.bf16.xpose.msra.mxu0 0
    %518 = vmatpush.bf16.xpose.msra.mxu0 0
    %519 = vmatpush.bf16.xpose.msra.mxu0 0
    %520 = vmatpush.bf16.xpose.msra.mxu0 0
    %521 = vmatpush.bf16.xpose.msra.mxu0 0
    %522 = vmatpush.bf16.xpose.msra.mxu0 0
    %523 = vmatpush.bf16.xpose.msra.mxu0 0
    %524 = vmatpush.bf16.xpose.msra.mxu0 %v515
    %525 = vmatmul.bf16.gmra.mxu0 %v512
    %v526 = vpop.f32.mrf.mxu0
    %v527 = vadd.f32 0.0, %v526
    %v528 = vpop.f32.mrf.mxu0
    %529 = vdwg.mxu0
    %v530 = vsel %vm447, %v527, -1e+30
    %v531 = vsel %vm200, %v530, -inf
    %532 = vmax.xlane.f32.xlu0 %v531
    %v533 = vpop.xlane.xlu0 %532
    %v534 = vsub.f32 %v530, %v533
    %v535 = vmul.f32 %v534, 1.442695
    %v536 = vpow.pop %v535
    %v537 = vsel %vm200, %v536, 0.0
    %538 = vadd.xlane.f32.xlu0 %v537
    %v539 = vpop.xlane.xlu0 %538
    %v540 = vrcp.pop %v539
    %v541 = vmul.f32 %v536, %v540
    %v542 = vpack.c.bf16 %v541, %v541
    %543 = vrot.lane.b32.xlu0 %v450, 56
    %v544 = vpop.permute.xlu0 %543
    %v546 = vsel %vm200, %v542, 0
    %v549 = vsel %vm238, %v544, 0
    %551 = vmatpush.bf16.msra.mxu0 0
    %552 = vmatpush.bf16.msra.mxu0 0
    %553 = vmatpush.bf16.msra.mxu0 0
    %554 = vmatpush.bf16.msra.mxu0 0
    %555 = vmatpush.bf16.msra.mxu0 0
    %556 = vmatpush.bf16.msra.mxu0 0
    %557 = vmatpush.bf16.msra.mxu0 0
    %558 = vmatpush.bf16.msra.mxu0 %v549
    %559 = vmatmul.bf16.gmra.mxu0 %v546
    %v560 = vpop.f32.mrf.mxu0
    %v561 = vadd.f32 0.0, %v560
    %v562 = vpop.f32.mrf.mxu0
    %563 = vdwg.mxu0
    %565 = vrot.lane.b32.xlu0 %v561, 8
    %v566 = vpop.permute.xlu0 %565
    %568 = vst.msk [vmem:[#allocation2 + $0x8] sm:$0xff] %vm317, %v566
    %569 = vrot.lane.b32.xlu0 %v450, 112
    %v570 = vpop.permute.xlu0 %569
    %571 = vrot.lane.b32.xlu0 %v450, 80
    %v572 = vpop.permute.xlu0 %571
    %v574 = vsel %vm200, %v570, 0
    %v577 = vsel %vm200, %v572, 0
    %579 = vmatpush.bf16.xpose.msra.mxu0 0
    %580 = vmatpush.bf16.xpose.msra.mxu0 0
    %581 = vmatpush.bf16.xpose.msra.mxu0 0
    %582 = vmatpush.bf16.xpose.msra.mxu0 0
    %583 = vmatpush.bf16.xpose.msra.mxu0 0
    %584 = vmatpush.bf16.xpose.msra.mxu0 0
    %585 = vmatpush.bf16.xpose.msra.mxu0 0
    %586 = vmatpush.bf16.xpose.msra.mxu0 %v577
    %587 = vmatmul.bf16.gmra.mxu0 %v574
    %v588 = vpop.f32.mrf.mxu0
    %v589 = vadd.f32 0.0, %v588
    %v590 = vpop.f32.mrf.mxu0
    %591 = vdwg.mxu0
    %v592 = vsel %vm447, %v589, -1e+30
    %v593 = vsel %vm200, %v592, -inf
    %594 = vmax.xlane.f32.xlu0 %v593
    %v595 = vpop.xlane.xlu0 %594
    %v596 = vsub.f32 %v592, %v595
    %v597 = vmul.f32 %v596, 1.442695
    %v598 = vpow.pop %v597
    %v599 = vsel %vm200, %v598, 0.0
    %600 = vadd.xlane.f32.xlu0 %v599
    %v601 = vpop.xlane.xlu0 %600
    %v602 = vrcp.pop %v601
    %v603 = vmul.f32 %v598, %v602
    %v604 = vpack.c.bf16 %v603, %v603
    %605 = vrot.lane.b32.xlu0 %v450, 48
    %v606 = vpop.permute.xlu0 %605
    %v608 = vsel %vm200, %v604, 0
    %v611 = vsel %vm238, %v606, 0
    %613 = vmatpush.bf16.msra.mxu0 0
    %614 = vmatpush.bf16.msra.mxu0 0
    %615 = vmatpush.bf16.msra.mxu0 0
    %616 = vmatpush.bf16.msra.mxu0 0
    %617 = vmatpush.bf16.msra.mxu0 0
    %618 = vmatpush.bf16.msra.mxu0 0
    %619 = vmatpush.bf16.msra.mxu0 0
    %620 = vmatpush.bf16.msra.mxu0 %v611
    %621 = vmatmul.bf16.gmra.mxu0 %v608
    %v622 = vpop.f32.mrf.mxu0
    %v623 = vadd.f32 0.0, %v622
    %v624 = vpop.f32.mrf.mxu0
    %625 = vdwg.mxu0
    %627 = vrot.lane.b32.xlu0 %v623, 16
    %v628 = vpop.permute.xlu0 %627
    %630 = vst.msk [vmem:[#allocation2 + $0x8] sm:$0xff] %vm380, %v628
    %631 = vrot.lane.b32.xlu0 %v450, 104
    %v632 = vpop.permute.xlu0 %631
    %633 = vrot.lane.b32.xlu0 %v450, 72
    %v634 = vpop.permute.xlu0 %633
    %v636 = vsel %vm200, %v632, 0
    %v639 = vsel %vm200, %v634, 0
    %641 = vmatpush.bf16.xpose.msra.mxu0 0
    %642 = vmatpush.bf16.xpose.msra.mxu0 0
    %643 = vmatpush.bf16.xpose.msra.mxu0 0
    %644 = vmatpush.bf16.xpose.msra.mxu0 0
    %645 = vmatpush.bf16.xpose.msra.mxu0 0
    %646 = vmatpush.bf16.xpose.msra.mxu0 0
    %647 = vmatpush.bf16.xpose.msra.mxu0 0
    %648 = vmatpush.bf16.xpose.msra.mxu0 %v639
    %649 = vmatmul.bf16.gmra.mxu0 %v636
    %v650 = vpop.f32.mrf.mxu0
    %v651 = vadd.f32 0.0, %v650
    %v652 = vpop.f32.mrf.mxu0
    %653 = vdwg.mxu0
    %v654 = vsel %vm447, %v651, -1e+30
    %v655 = vsel %vm200, %v654, -inf
    %656 = vmax.xlane.f32.xlu0 %v655
    %v657 = vpop.xlane.xlu0 %656
    %v658 = vsub.f32 %v654, %v657
    %v659 = vmul.f32 %v658, 1.442695
    %v660 = vpow.pop %v659
    %v661 = vsel %vm200, %v660, 0.0
    %662 = vadd.xlane.f32.xlu0 %v661
    %v663 = vpop.xlane.xlu0 %662
    %v664 = vrcp.pop %v663
    %v665 = vmul.f32 %v660, %v664
    %v666 = vpack.c.bf16 %v665, %v665
    %667 = vrot.lane.b32.xlu0 %v450, 40
    %v668 = vpop.permute.xlu0 %667
    %v670 = vsel %vm200, %v666, 0
    %v673 = vsel %vm238, %v668, 0
    %675 = vmatpush.bf16.msra.mxu0 0
    %676 = vmatpush.bf16.msra.mxu0 0
    %677 = vmatpush.bf16.msra.mxu0 0
    %678 = vmatpush.bf16.msra.mxu0 0
    %679 = vmatpush.bf16.msra.mxu0 0
    %680 = vmatpush.bf16.msra.mxu0 0
    %681 = vmatpush.bf16.msra.mxu0 0
    %682 = vmatpush.bf16.msra.mxu0 %v673
    %683 = vmatmul.bf16.gmra.mxu0 %v670
    %v684 = vpop.f32.mrf.mxu0
    %v685 = vadd.f32 0.0, %v684
    %v686 = vpop.f32.mrf.mxu0
    %687 = vdwg.mxu0
    %689 = vrot.lane.b32.xlu0 %v685, 24
    %v690 = vpop.permute.xlu0 %689
    %692 = vst.msk [vmem:[#allocation2 + $0x8] sm:$0xff] %vm443, %v690
    %v693 = vld [vmem:[#allocation2] sm:$0xff]
    %v694 = vld [vmem:[#allocation2 + $0x8] sm:$0xff]
    %v695 = vpack.c.bf16 %v694, %v693
    %v696 = vld [vmem:[#allocation10] sm:$0xf]
    %v697 = vld [vmem:[#allocation10 + $0x4] sm:$0xf]
    %v698 = vld [vmem:[#allocation10 + $0x8] sm:$0xf]
    %v699 = vld [vmem:[#allocation10 + $0xc] sm:$0xf]
    %v700 = vld [vmem:[%s7] sm:$0x1]
    %v702 = vperm.slane %v700, 0
    %v708 = vunpack.c.l.b16 %v696
    %v709 = vunpack.c.l.b16 %v697
    %v710 = vunpack.c.l.b16 %v698
    %v711 = vunpack.c.l.b16 %v699
    %v712 = vpack.c.b16 %v709, %v708
    %v713 = vpack.c.b16 %v711, %v710
    %v717 = vsel %vm86, %v695, 0
    %719 = vmatpush.bf16.msra.mxu0 0
    %720 = vmatpush.bf16.msra.mxu0 0
    %721 = vmatpush.bf16.msra.mxu0 0
    %722 = vmatpush.bf16.msra.mxu0 0
    %723 = vmatpush.bf16.msra.mxu0 0
    %724 = vmatpush.bf16.msra.mxu0 0
    %725 = vmatpush.bf16.msra.mxu0 %v713
    %726 = vmatpush.bf16.msra.mxu0 %v712
    %727 = vmatmul.bf16.gmra.mxu0 %v717
    %v728 = vpop.f32.mrf.mxu0
    %v729 = vadd.f32 %v702, %v728
    %v730 = vpop.f32.mrf.mxu0
    %v731 = vadd.f32 %v702, %v730
    %732 = vdwg.mxu0
    %733 = vst.msk [vmem:[#allocation11] sm:$0xff] %vm86, %v729
    %734 = vst.msk [vmem:[#allocation11 + $0x8] sm:$0xff] %vm86, %v731
    // Predicated region
    $region42: #{tpu_custom_call.1} parent=1 // pred_check
      _
    $region43: #{tpu_custom_call.1} parent=1 // pred_check_branch
      %736 = sbr.rel (0) target = $region45
    $region44: #{tpu_custom_call.1} parent=1 // pred_region
      %738 = vsyncadd [#allocation7], 0
      %s739 = sshll.u32 [#allocation11], 4
      %s740 = int_to_ptr.vmem [resolvable:$true] %s739
      %s741 = sshll.u32 %s8, 4
      %s742 = int_to_ptr.hbm [resolvable:$true] %s741
      %747 = dma.vmem_to_hbm [thread:$0]  %s740, 256, %s742, [#allocation7], 128, 128, 8
    $region45: #{tpu_custom_call.1} parent=1 // pred_fallthru
      _
    // Predicated region
    $region46: #{tpu_custom_call.1} parent=1 // pred_check
      _
    $region47: #{tpu_custom_call.1} parent=1 // pred_check_branch
      %749 = sbr.rel (0) target = $region49
    $region48: #{tpu_custom_call.1} parent=1 // pred_region
      %751 = dma.done [#allocation7], 256
    $region49: #{tpu_custom_call.1} parent=1 // pred_fallthru
      _
    %752 = vsyncpa [#allocation6], 1
    %753 = vsyncpa [#allocation9], 1
    %754 = vsyncpa [#allocation7], 1

</llo_original>
